<compile_context>
chip_gen: v7x
topology: tpu7x:2x2x1
jax: 0.10.0
libtpu: 0.0.40
codegen_flags: <defaults>
</compile_context>

<pallas_src>
import functools

import jax
import jax.numpy as jnp
from jax import lax
from jax.experimental import pallas as pl
from jax.experimental.pallas import tpu as pltpu


def bahdanau_kernel(q_ref, k_ref, wa_ref, ba_ref, ua_ref, bu_ref, va_ref,
                    ctx_ref, w_ref):
    # Per-step tiles:
    #   q_ref : (TB, H)        k_ref : (TB, S, H)
    #   wa/ua : (H, H)  (PyTorch (out,in) layout, consumed untransposed)
    #   ba/bu : (1, H)         va    : (1, H)
    #   ctx_ref: (TB, H)       w_ref : (TB, S)
    TB, S, H = k_ref.shape

    q = q_ref[...]                                   # (TB, H)
    k = k_ref[...]                                   # (TB, S, H)

    # Contract the input (last) dim of x against the "in" dim of the (out,in)
    # PyTorch weight:  x @ W.T  without materializing a transpose.
    dn = (((1,), (1,)), ((), ()))

    # Wa(query): one (TB,H) x (H,H) matmul.
    wa_q = lax.dot_general(q, wa_ref[...], dn,
                           preferred_element_type=jnp.float32) + ba_ref[...]   # (TB, H)

    # Ua(keys): ONE flattened (TB*S,H) x (H,H) matmul for the whole block.
    k_flat = k.reshape(TB * S, H)
    ua_k = lax.dot_general(k_flat, ua_ref[...], dn,
                           preferred_element_type=jnp.float32) + bu_ref[...]   # (TB*S, H)

    # tanh(Wa(q) + Ua(k)) with q broadcast over the source axis. (f32 VPU/EUP)
    t = jnp.tanh(ua_k.reshape(TB, S, H) + wa_q[:, None, :])                    # (TB, S, H)

    # Va projection -> lane-dense (TB, S) scores. (Va bias cancels in softmax.)
    va = va_ref[0].astype(jnp.float32)                                         # (H,)
    scores = jnp.sum(t * va, axis=-1)                                          # (TB, S)

    # Numerically-stable softmax along the lane (source) axis.
    m = jnp.max(scores, axis=-1, keepdims=True)                                # (TB, 1)
    e = jnp.exp(scores - m)                                                    # (TB, S)
    w = e * pl.reciprocal(jnp.sum(e, axis=-1, keepdims=True), approx=False)    # (TB, S)

    # context = sum_s w[b,s] * keys[b,s,:]  — VPU weighted sum (S is small).
    ctx = jnp.sum(w[:, :, None] * k.astype(jnp.float32), axis=1)               # (TB, H)

    ctx_ref[...] = ctx.astype(ctx_ref.dtype)
    w_ref[...] = w.astype(w_ref.dtype)


def _pick_block_b(B, S, H, itemsize, vmem_budget_bytes=8 * 1024 * 1024):
    """Largest legal batch tile that keeps the double-buffered keys tile small.

    Conservative 8 MiB keys budget keeps headroom on v7x (64 MiB VMEM,
    32 MiB default scoped limit) as well as v5e/v6e.
    """
    cap = max(1, vmem_budget_bytes // (2 * S * H * itemsize))
    if B <= 8 or B % 8 != 0:
        return B            # full-dim block is always layout-legal
    tb = 8
    for cand in range(8, B + 1, 8):   # multiples of 8 keep the sublane dim aligned
        if B % cand == 0 and cand <= cap:
            tb = cand
    return tb


@functools.partial(jax.jit, static_argnames=("block_b", "matmul_dtype"))
def bahdanau_attention(query, keys, params, *, block_b=None, matmul_dtype=None):
    """query: (B, 1, H), keys: (B, S, H)  ->  (context (B,1,H), weights (B,1,S))."""
    B, Q, H = query.shape
    assert Q == 1
    _, S, _ = keys.shape

    q2d = query.reshape(B, H)
    keys_in = keys
    wa_w = params["wa_w"]                 # (H, H)  PyTorch (out, in)
    ua_w = params["ua_w"]                 # (H, H)
    va_w = params["va_w"]                 # (1, H)
    ba = params["wa_b"].reshape(1, H)
    bu = params["ua_b"].reshape(1, H)
    # params["va_b"] is intentionally unused: it cancels in the softmax.

    # Optional bf16 MXU operands (v6e/v7x throughput + halved keys DMA).
    # Left off by default to keep the 1e-5 f32 tolerance in the self-test.
    if matmul_dtype is not None:
        q2d = q2d.astype(matmul_dtype)
        keys_in = keys.astype(matmul_dtype)
        wa_w = wa_w.astype(matmul_dtype)
        ua_w = ua_w.astype(matmul_dtype)

    tb = block_b if block_b is not None else _pick_block_b(
        B, S, H, jnp.dtype(keys_in.dtype).itemsize)
    assert B % tb == 0, f"block_b={tb} must divide batch={B}"

    grid_spec = pltpu.PrefetchScalarGridSpec(
        num_scalar_prefetch=0,
        grid=(B // tb,),
        in_specs=[
            pl.BlockSpec((tb, H), lambda b: (b, 0)),        # query rows
            pl.BlockSpec((tb, S, H), lambda b: (b, 0, 0)),  # keys block
            pl.BlockSpec((H, H), lambda b: (0, 0)),         # Wa weight (resident)
            pl.BlockSpec((1, H), lambda b: (0, 0)),         # Wa bias
            pl.BlockSpec((H, H), lambda b: (0, 0)),         # Ua weight (resident)
            pl.BlockSpec((1, H), lambda b: (0, 0)),         # Ua bias
            pl.BlockSpec((1, H), lambda b: (0, 0)),         # Va weight
        ],
        out_specs=[
            pl.BlockSpec((tb, H), lambda b: (b, 0)),        # context (lane-dense 2D)
            pl.BlockSpec((tb, S), lambda b: (b, 0)),        # weights (lane-dense 2D)
        ],
    )

    ctx2d, w2d = pl.pallas_call(
        bahdanau_kernel,
        out_shape=(
            jax.ShapeDtypeStruct((B, H), query.dtype),
            jax.ShapeDtypeStruct((B, S), query.dtype),
        ),
        grid_spec=grid_spec,
        compiler_params=pltpu.CompilerParams(
            dimension_semantics=("parallel",)),     # batch axis is independent
    )(q2d, keys_in, wa_w, ba, ua_w, bu, va_w)

    # Restore the module's (B, 1, H) / (B, 1, S) convention in the wrapper.
    return ctx2d.reshape(B, 1, H), w2d.reshape(B, 1, S)


def reference(query, keys, params):
    # Pure-JAX reference mirroring the PyTorch forward (includes the Va bias,
    # which cancels in the softmax — used to verify the kernel's omission).
    wa = query @ params["wa_w"].T + params["wa_b"]                   # (B, 1, H)
    ua = keys @ params["ua_w"].T + params["ua_b"]                    # (B, S, H)
    scores = jnp.tanh(wa + ua) @ params["va_w"].T + params["va_b"]   # (B, S, 1)
    scores = jnp.squeeze(scores, 2)[:, None, :]                      # (B, 1, S)
    weights = jax.nn.softmax(scores, axis=-1)
    context = jnp.einsum("bqs,bsh->bqh", weights, keys)
    return context, weights


if __name__ == "__main__":
    B, S, H = 16, 8, 32
    key = jax.random.PRNGKey(0)
    kq, kk, k1, k2, k3, k4, k5, k6 = jax.random.split(key, 8)

    # Deterministic synthetic parameters (PyTorch Linear shapes: (out, in) + (out,)).
    bound = 1.0 / (H ** 0.5)
    params = {
        "wa_w": jax.random.uniform(k1, (H, H), jnp.float32, -bound, bound),
        "wa_b": jax.random.uniform(k2, (H,), jnp.float32, -bound, bound),
        "ua_w": jax.random.uniform(k3, (H, H), jnp.float32, -bound, bound),
        "ua_b": jax.random.uniform(k4, (H,), jnp.float32, -bound, bound),
        "va_w": jax.random.uniform(k5, (1, H), jnp.float32, -bound, bound),
        "va_b": jax.random.uniform(k6, (1,), jnp.float32, -bound, bound),
    }

    query = jax.random.normal(kq, (B, 1, H), jnp.float32)
    keys = jax.random.normal(kk, (B, S, H), jnp.float32)

    ref_ctx, ref_w = reference(query, keys, params)

    # 1) Auto-picked batch tile (single grid step here).
    context, weights = bahdanau_attention(query, keys, params)
    context = jax.block_until_ready(context)
    weights = jax.block_until_ready(weights)
    assert context.shape == (B, 1, H) and weights.shape == (B, 1, S)
    assert jnp.allclose(context, ref_ctx, atol=1e-5, rtol=1e-5)
    assert jnp.allclose(weights, ref_w, atol=1e-5, rtol=1e-5)

    # 2) Forced smaller tile to exercise a multi-step grid (index maps, residents).
    context2, weights2 = bahdanau_attention(query, keys, params, block_b=8)
    context2 = jax.block_until_ready(context2)
    weights2 = jax.block_until_ready(weights2)
    assert jnp.allclose(context2, ref_ctx, atol=1e-5, rtol=1e-5)
    assert jnp.allclose(weights2, ref_w, atol=1e-5, rtol=1e-5)

    print("KERNEL_OK")
</pallas_src>

<mosaic_0001>
module attributes {stable_mosaic.version = 11 : i64} {
  func.func @bahdanau_kernel(%arg0: i32, %arg1: memref<16x32xf32, #tpu.memory_space<vmem>>, %arg2: memref<16x8x32xf32, #tpu.memory_space<vmem>>, %arg3: memref<32x32xf32, #tpu.memory_space<vmem>>, %arg4: memref<1x32xf32, #tpu.memory_space<vmem>>, %arg5: memref<32x32xf32, #tpu.memory_space<vmem>>, %arg6: memref<1x32xf32, #tpu.memory_space<vmem>>, %arg7: memref<1x32xf32, #tpu.memory_space<vmem>>, %arg8: memref<16x32xf32, #tpu.memory_space<vmem>>, %arg9: memref<16x8xf32, #tpu.memory_space<vmem>>) attributes {dimension_semantics = [#tpu.dimension_semantics<parallel>], iteration_bounds = array<i64: 1>, scalar_prefetch = 0 : i64, scratch_operands = 0 : i64, tpu.core_type = #tpu.core_type<tc>, window_params = [{transform_indices = @transform_0, window_bounds = array<i64: 16, 32>}, {transform_indices = @transform_1, window_bounds = array<i64: 16, 8, 32>}, {pipeline_mode = #tpu.pipeline_mode<synchronous>, transform_indices = @transform_2, window_bounds = array<i64: 32, 32>}, {pipeline_mode = #tpu.pipeline_mode<synchronous>, transform_indices = @transform_3, window_bounds = array<i64: 1, 32>}, {pipeline_mode = #tpu.pipeline_mode<synchronous>, transform_indices = @transform_4, window_bounds = array<i64: 32, 32>}, {pipeline_mode = #tpu.pipeline_mode<synchronous>, transform_indices = @transform_5, window_bounds = array<i64: 1, 32>}, {pipeline_mode = #tpu.pipeline_mode<synchronous>, transform_indices = @transform_6, window_bounds = array<i64: 1, 32>}, {transform_indices = @transform_7, window_bounds = array<i64: 16, 32>}, {transform_indices = @transform_8, window_bounds = array<i64: 16, 8>}]} {
    %c0 = arith.constant 0 : index
    %c0_0 = arith.constant 0 : index
    %0 = vector.load %arg1[%c0, %c0_0] : memref<16x32xf32, #tpu.memory_space<vmem>>, vector<16x32xf32>
    %c0_1 = arith.constant 0 : index
    %c0_2 = arith.constant 0 : index
    %c0_3 = arith.constant 0 : index
    %1 = vector.load %arg2[%c0_1, %c0_2, %c0_3] : memref<16x8x32xf32, #tpu.memory_space<vmem>>, vector<16x8x32xf32>
    %c0_4 = arith.constant 0 : index
    %c0_5 = arith.constant 0 : index
    %2 = vector.load %arg3[%c0_4, %c0_5] : memref<32x32xf32, #tpu.memory_space<vmem>>, vector<32x32xf32>
    %cst = arith.constant dense<0.000000e+00> : vector<16x32xf32>
    %3 = tpu.matmul %0, %2, %cst {dimension_numbers = #tpu.dot_dimension_numbers<[1], [1], [0], [0], [0, 0, 1, 0], [], []>} : vector<16x32xf32>, vector<32x32xf32>, vector<16x32xf32> -> vector<16x32xf32>
    %c0_6 = arith.constant 0 : index
    %c0_7 = arith.constant 0 : index
    %4 = vector.load %arg4[%c0_6, %c0_7] : memref<1x32xf32, #tpu.memory_space<vmem>>, vector<1x32xf32>
    %5 = vector.broadcast %4 : vector<1x32xf32> to vector<16x32xf32>
    %6 = arith.addf %3, %5 : vector<16x32xf32>
    %7 = vector.shape_cast %1 : vector<16x8x32xf32> to vector<128x32xf32>
    %c0_8 = arith.constant 0 : index
    %c0_9 = arith.constant 0 : index
    %8 = vector.load %arg5[%c0_8, %c0_9] : memref<32x32xf32, #tpu.memory_space<vmem>>, vector<32x32xf32>
    %cst_10 = arith.constant dense<0.000000e+00> : vector<128x32xf32>
    %9 = tpu.matmul %7, %8, %cst_10 {dimension_numbers = #tpu.dot_dimension_numbers<[1], [1], [0], [0], [0, 0, 1, 0], [], []>} : vector<128x32xf32>, vector<32x32xf32>, vector<128x32xf32> -> vector<128x32xf32>
    %c0_11 = arith.constant 0 : index
    %c0_12 = arith.constant 0 : index
    %10 = vector.load %arg6[%c0_11, %c0_12] : memref<1x32xf32, #tpu.memory_space<vmem>>, vector<1x32xf32>
    %11 = vector.broadcast %10 : vector<1x32xf32> to vector<128x32xf32>
    %12 = arith.addf %9, %11 : vector<128x32xf32>
    %13 = vector.shape_cast %12 : vector<128x32xf32> to vector<16x8x32xf32>
    %14 = vector.shape_cast %6 : vector<16x32xf32> to vector<16x1x32xf32>
    %15 = vector.broadcast %14 : vector<16x1x32xf32> to vector<16x8x32xf32>
    %16 = arith.addf %13, %15 : vector<16x8x32xf32>
    %17 = math.tanh %16 : vector<16x8x32xf32>
    %c0_13 = arith.constant 0 : index
    %c0_14 = arith.constant 0 : index
    %18 = vector.load %arg7[%c0_13, %c0_14] : memref<1x32xf32, #tpu.memory_space<vmem>>, vector<1x32xf32>
    %19 = vector.shape_cast %18 : vector<1x32xf32> to vector<32xf32>
    %20 = vector.shape_cast %19 : vector<32xf32> to vector<1x1x32xf32>
    %21 = vector.broadcast %20 : vector<1x1x32xf32> to vector<16x8x32xf32>
    %22 = arith.mulf %17, %21 : vector<16x8x32xf32>
    %cst_15 = arith.constant dense<0.000000e+00> : vector<16x8xf32>
    %23 = vector.multi_reduction <add>, %22, %cst_15 [2] : vector<16x8x32xf32> to vector<16x8xf32>
    %cst_16 = arith.constant dense<0xFF800000> : vector<16xf32>
    %24 = vector.multi_reduction <maximumf>, %23, %cst_16 [1] : vector<16x8xf32> to vector<16xf32>
    %25 = vector.shape_cast %24 : vector<16xf32> to vector<16x1xf32>
    %26 = vector.broadcast %25 : vector<16x1xf32> to vector<16x8xf32>
    %27 = arith.subf %23, %26 : vector<16x8xf32>
    %28 = math.exp %27 : vector<16x8xf32>
    %cst_17 = arith.constant dense<0.000000e+00> : vector<16xf32>
    %29 = vector.multi_reduction <add>, %28, %cst_17 [1] : vector<16x8xf32> to vector<16xf32>
    %30 = vector.shape_cast %29 : vector<16xf32> to vector<16x1xf32>
    %31 = tpu.reciprocal %30 : vector<16x1xf32> -> vector<16x1xf32>
    %32 = vector.broadcast %31 : vector<16x1xf32> to vector<16x8xf32>
    %33 = arith.mulf %28, %32 : vector<16x8xf32>
    %34 = vector.shape_cast %33 : vector<16x8xf32> to vector<16x8x1xf32>
    %35 = vector.broadcast %34 : vector<16x8x1xf32> to vector<16x8x32xf32>
    %36 = arith.mulf %35, %1 : vector<16x8x32xf32>
    %cst_18 = arith.constant dense<0.000000e+00> : vector<16x32xf32>
    %37 = vector.multi_reduction <add>, %36, %cst_18 [1] : vector<16x8x32xf32> to vector<16x32xf32>
    %c0_19 = arith.constant 0 : index
    %c0_20 = arith.constant 0 : index
    %38 = vector.load %arg8[%c0_19, %c0_20] : memref<16x32xf32, #tpu.memory_space<vmem>>, vector<16x32xf32>
    tpu.vector_store %arg8[%c0_19, %c0_20], %37 {strides = array<i32>} : memref<16x32xf32, #tpu.memory_space<vmem>>, vector<16x32xf32>,
    %c0_21 = arith.constant 0 : index
    %c0_22 = arith.constant 0 : index
    %39 = vector.load %arg9[%c0_21, %c0_22] : memref<16x8xf32, #tpu.memory_space<vmem>>, vector<16x8xf32>
    tpu.vector_store %arg9[%c0_21, %c0_22], %33 {strides = array<i32>} : memref<16x8xf32, #tpu.memory_space<vmem>>, vector<16x8xf32>,
    return
  }
  func.func @transform_0(%arg0: i32) -> (i32, i32) {
    %c0_i32 = arith.constant 0 : i32
    %c0_i32_0 = arith.constant 0 : i32
    return %arg0, %c0_i32 : i32, i32
  }
  func.func @transform_1(%arg0: i32) -> (i32, i32, i32) {
    %c0_i32 = arith.constant 0 : i32
    %c0_i32_0 = arith.constant 0 : i32
    %c0_i32_1 = arith.constant 0 : i32
    return %arg0, %c0_i32, %c0_i32_0 : i32, i32, i32
  }
  func.func @transform_2(%arg0: i32) -> (i32, i32) {
    %c0_i32 = arith.constant 0 : i32
    %c0_i32_0 = arith.constant 0 : i32
    %c0_i32_1 = arith.constant 0 : i32
    return %c0_i32, %c0_i32_0 : i32, i32
  }
  func.func @transform_3(%arg0: i32) -> (i32, i32) {
    %c0_i32 = arith.constant 0 : i32
    %c0_i32_0 = arith.constant 0 : i32
    %c0_i32_1 = arith.constant 0 : i32
    return %c0_i32, %c0_i32_0 : i32, i32
  }
  func.func @transform_4(%arg0: i32) -> (i32, i32) {
    %c0_i32 = arith.constant 0 : i32
    %c0_i32_0 = arith.constant 0 : i32
    %c0_i32_1 = arith.constant 0 : i32
    return %c0_i32, %c0_i32_0 : i32, i32
  }
  func.func @transform_5(%arg0: i32) -> (i32, i32) {
    %c0_i32 = arith.constant 0 : i32
    %c0_i32_0 = arith.constant 0 : i32
    %c0_i32_1 = arith.constant 0 : i32
    return %c0_i32, %c0_i32_0 : i32, i32
  }
  func.func @transform_6(%arg0: i32) -> (i32, i32) {
    %c0_i32 = arith.constant 0 : i32
    %c0_i32_0 = arith.constant 0 : i32
    %c0_i32_1 = arith.constant 0 : i32
    return %c0_i32, %c0_i32_0 : i32, i32
  }
  func.func @transform_7(%arg0: i32) -> (i32, i32) {
    %c0_i32 = arith.constant 0 : i32
    %c0_i32_0 = arith.constant 0 : i32
    return %arg0, %c0_i32 : i32, i32
  }
  func.func @transform_8(%arg0: i32) -> (i32, i32) {
    %c0_i32 = arith.constant 0 : i32
    %c0_i32_0 = arith.constant 0 : i32
    return %arg0, %c0_i32 : i32, i32
  }
}

</mosaic_0001>

<llo_original>
// kernel: bahdanau_attention.1
$region0: #{bahdanau_attention.1}
  #allocation0 [shape = 'u32[]', space=smem, size = 0x4, offset = 0x4, fixed_abs, tag = 'smem constant byte address 0x4 - core index']
  #allocation1 [shape = 'u32[144,128]{1,0:T(1,128)}', space=vmem, size = 0x12000, scoped, tag = 'internal scratch']
  %s0 = inlined_call_operand.hbm [shape: f32[16,32], index: 0, kind: input, shape index: {}]
  %s1 = inlined_call_operand.hbm [shape: f32[16,8,32], index: 1, kind: input, shape index: {}]
  %s2 = inlined_call_operand.vmem [shape: f32[32,32], index: 2, kind: input, shape index: {}]
  %s3 = inlined_call_operand.vmem [shape: f32[1,32], index: 3, kind: input, shape index: {}]
  %s4 = inlined_call_operand.hbm [shape: f32[32,32], index: 4, kind: input, shape index: {}]
  %s5 = inlined_call_operand.vmem [shape: f32[1,32], index: 5, kind: input, shape index: {}]
  %s6 = inlined_call_operand.hbm [shape: f32[1,32], index: 6, kind: input, shape index: {}]
  %s7 = inlined_call_operand.hbm [shape: f32[16,32], index: 7, kind: output, shape index: {0}]
  %s8 = inlined_call_operand.vmem [shape: f32[16,8], index: 8, kind: output, shape index: {1}]
  %9 = xla_tuple %s7, %s8
  %s10 = sld [smem:[#allocation0]]
  $region62: #{bahdanau_attention.1} parent=0
    _
  %s12 = ssub.s32 1, %s10
  %s13 = scalar_select 0, %s12, %s10
  $region1: #{bahdanau_attention.1} parent=0
    #allocation2 [shape = 'u8[8192]{0}', space=vmem, size = 0x2000, scoped, tag = 'input window, operand 0, single buffered']
    #allocation3 [shape = 's32[1]{0}', space=sflag, size = 0x4, scoped, tag = 'scoped memory for bahdanau_attention.1']
    #allocation4 [shape = 's32[1]{0}', space=sflag, size = 0x4, scoped, tag = 'scoped memory for bahdanau_attention.1']
    #allocation5 [shape = 'u8[65536]{0}', space=vmem, size = 0x10000, scoped, tag = 'input window, operand 1, single buffered']
    #allocation6 [shape = 's32[1]{0}', space=sflag, size = 0x4, scoped, tag = 'scoped memory for bahdanau_attention.1']
    #allocation7 [shape = 'u8[16384]{0}', space=vmem, size = 0x4000, scoped, tag = 'input window, operand 4, single buffered']
    #allocation8 [shape = 'u8[512]{0}', space=vmem, size = 0x400, scoped, tag = 'input window, operand 6, single buffered']
    #allocation9 [shape = 's32[1]{0}', space=sflag, size = 0x4, scoped, tag = 'scoped memory for bahdanau_attention.1']
    #allocation10 [shape = 'u8[8192]{0}', space=vmem, size = 0x2000, scoped, tag = 'output window, operand 0, single buffered']
    %14 = vsyncpa [#allocation3], 0
    %15 = vsyncpa [#allocation6], 0
    %16 = vsyncpa [#allocation9], 0
    %17 = vsyncpa [#allocation4], 0
    // Predicated region
    $region2: #{bahdanau_attention.1} parent=1 // pred_check
      _
    $region3: #{bahdanau_attention.1} parent=1 // pred_check_branch
      %19 = sbr.rel (0) target = $region5
    $region4: #{bahdanau_attention.1} parent=1 // pred_region
      %s21 = ssub.s32 256, 256
      %22 = vsyncadd [#allocation3], %s21
      %s23 = sshll.u32 [#allocation2], 4
      %s24 = int_to_ptr.vmem [resolvable:$true] %s23
      %29 = dma.hbm_to_vmem [thread:$0]  %s0, 256, %s24, [#allocation3], 128, 128, 8
    $region5: #{bahdanau_attention.1} parent=1 // pred_fallthru
      _
    // Predicated region
    $region6: #{bahdanau_attention.1} parent=1 // pred_check
      _
    $region7: #{bahdanau_attention.1} parent=1 // pred_check_branch
      %31 = sbr.rel (0) target = $region9
    $region8: #{bahdanau_attention.1} parent=1 // pred_region
      %s33 = ssub.s32 2048, 2048
      %34 = vsyncadd [#allocation6], %s33
      %s35 = sshll.u32 [#allocation5], 4
      %s36 = int_to_ptr.vmem [resolvable:$true] %s35
      %41 = dma.hbm_to_vmem [thread:$0]  %s1, 2048, %s36, [#allocation6], 128, 128, 8
    $region9: #{bahdanau_attention.1} parent=1 // pred_fallthru
      _
    // Predicated region
    $region10: #{bahdanau_attention.1} parent=1 // pred_check
      _
    $region11: #{bahdanau_attention.1} parent=1 // pred_check_branch
      %43 = sbr.rel (0) target = $region13
    $region12: #{bahdanau_attention.1} parent=1 // pred_region
      _
    $region13: #{bahdanau_attention.1} parent=1 // pred_fallthru
      _
    // Predicated region
    $region14: #{bahdanau_attention.1} parent=1 // pred_check
      _
    $region15: #{bahdanau_attention.1} parent=1 // pred_check_branch
      %45 = sbr.rel (0) target = $region17
    $region16: #{bahdanau_attention.1} parent=1 // pred_region
      _
    $region17: #{bahdanau_attention.1} parent=1 // pred_fallthru
      _
    // Predicated region
    $region18: #{bahdanau_attention.1} parent=1 // pred_check
      _
    $region19: #{bahdanau_attention.1} parent=1 // pred_check_branch
      %47 = sbr.rel (0) target = $region21
    $region20: #{bahdanau_attention.1} parent=1 // pred_region
      %s49 = ssub.s32 512, 512
      %50 = vsyncadd [#allocation6], %s49
      %s51 = sshll.u32 [#allocation7], 4
      %s52 = int_to_ptr.vmem [resolvable:$true] %s51
      %57 = dma.hbm_to_vmem [thread:$0]  %s4, 512, %s52, [#allocation6], 128, 128, 8
    $region21: #{bahdanau_attention.1} parent=1 // pred_fallthru
      _
    // Predicated region
    $region22: #{bahdanau_attention.1} parent=1 // pred_check
      _
    $region23: #{bahdanau_attention.1} parent=1 // pred_check_branch
      %59 = sbr.rel (0) target = $region25
    $region24: #{bahdanau_attention.1} parent=1 // pred_region
      _
    $region25: #{bahdanau_attention.1} parent=1 // pred_fallthru
      _
    // Predicated region
    $region26: #{bahdanau_attention.1} parent=1 // pred_check
      _
    $region27: #{bahdanau_attention.1} parent=1 // pred_check_branch
      %61 = sbr.rel (0) target = $region29
    $region28: #{bahdanau_attention.1} parent=1 // pred_region
      %s63 = ssub.s32 16, 16
      %64 = vsyncadd [#allocation9], %s63
      %s66 = sshll.u32 [#allocation8], 4
      %s67 = int_to_ptr.vmem [resolvable:$true] %s66
      %69 = dma.hbm_to_vmem [thread:$0]  %s6, 16, %s67, [#allocation9]
    $region29: #{bahdanau_attention.1} parent=1 // pred_fallthru
      _
    // Predicated region
    $region30: #{bahdanau_attention.1} parent=1 // pred_check
      _
    $region31: #{bahdanau_attention.1} parent=1 // pred_check_branch
      %71 = sbr.rel (0) target = $region33
    $region32: #{bahdanau_attention.1} parent=1 // pred_region
      %72 = dma.done [#allocation3], 256
    $region33: #{bahdanau_attention.1} parent=1 // pred_fallthru
      _
    // Predicated region
    $region34: #{bahdanau_attention.1} parent=1 // pred_check
      _
    $region35: #{bahdanau_attention.1} parent=1 // pred_check_branch
      %74 = sbr.rel (0) target = $region37
    $region36: #{bahdanau_attention.1} parent=1 // pred_region
      %75 = dma.done [#allocation6], 2048
    $region37: #{bahdanau_attention.1} parent=1 // pred_fallthru
      _
    // Predicated region
    $region38: #{bahdanau_attention.1} parent=1 // pred_check
      _
    $region39: #{bahdanau_attention.1} parent=1 // pred_check_branch
      %77 = sbr.rel (0) target = $region41
    $region40: #{bahdanau_attention.1} parent=1 // pred_region
      %78 = dma.done [#allocation6], 512
    $region41: #{bahdanau_attention.1} parent=1 // pred_fallthru
      _
    // Predicated region
    $region42: #{bahdanau_attention.1} parent=1 // pred_check
      _
    $region43: #{bahdanau_attention.1} parent=1 // pred_check_branch
      %80 = sbr.rel (0) target = $region45
    $region44: #{bahdanau_attention.1} parent=1 // pred_region
      %81 = dma.done [#allocation9], 16
    $region45: #{bahdanau_attention.1} parent=1 // pred_fallthru
      _
    %v82 = vld [vmem:[#allocation2] sm:$0xff]
    %v83 = vld [vmem:[#allocation2 + $0x8] sm:$0xff]
    %v84 = vld [vmem:[#allocation5] sm:$0xff]
    %v85 = vld [vmem:[#allocation5 + $0x8] sm:$0xff]
    %v86 = vld [vmem:[#allocation5 + $0x10] sm:$0xff]
    %v87 = vld [vmem:[#allocation5 + $0x18] sm:$0xff]
    %v88 = vld [vmem:[#allocation5 + $0x20] sm:$0xff]
    %v89 = vld [vmem:[#allocation5 + $0x28] sm:$0xff]
    %v90 = vld [vmem:[#allocation5 + $0x30] sm:$0xff]
    %v91 = vld [vmem:[#allocation5 + $0x38] sm:$0xff]
    %v92 = vld [vmem:[#allocation5 + $0x40] sm:$0xff]
    %v93 = vld [vmem:[#allocation5 + $0x48] sm:$0xff]
    %v94 = vld [vmem:[#allocation5 + $0x50] sm:$0xff]
    %v95 = vld [vmem:[#allocation5 + $0x58] sm:$0xff]
    %v96 = vld [vmem:[#allocation5 + $0x60] sm:$0xff]
    %v97 = vld [vmem:[#allocation5 + $0x68] sm:$0xff]
    %v98 = vld [vmem:[#allocation5 + $0x70] sm:$0xff]
    %v99 = vld [vmem:[#allocation5 + $0x78] sm:$0xff]
    %v100 = vld [vmem:[%s2] sm:$0xff]
    %v101 = vld [vmem:[%s2 + $0x8] sm:$0xff]
    %v102 = vld [vmem:[%s2 + $0x10] sm:$0xff]
    %v103 = vld [vmem:[%s2 + $0x18] sm:$0xff]
    %v104 = vld [vmem:[%s3] sm:$0x1]
    %v106 = vlaneseq
    %v107 = vshrl.u32 %v106, 7
    %v108 = vsub.s32 0, %v107
    %v109 = vrot.slane %v104, %v108
    %vm111 = vcmask 261120
    %v113 = vsel %vm111, %v82, 0
    %v116 = vsel %vm111, %v83, 0
    %v119 = vsel %vm111, %v100, 0
    %v122 = vsel %vm111, %v101, 0
    %v125 = vsel %vm111, %v102, 0
    %v128 = vsel %vm111, %v103, 0
    %130 = vmatprep.subr.mxu0 0.0
    %131 = vmatpush1.xpose.msra.mxu0 %v119
    %132 = vmatprep.subr.mxu0 0.0
    %133 = vmatpush1.xpose.msra.mxu0 %v122
    %134 = vmatprep.subr.mxu0 0.0
    %135 = vmatpush1.xpose.msra.mxu0 %v125
    %136 = vmatprep.subr.mxu0 0.0
    %137 = vmatpush1.xpose.msra.mxu0 %v128
    %138 = vmatprep.subr.mxu0 0.0
    %139 = vmatpush1.xpose.msra.mxu0 0.0
    %140 = vmatprep.subr.mxu0 0.0
    %141 = vmatpush1.xpose.msra.mxu0 0.0
    %142 = vmatprep.subr.mxu0 0.0
    %143 = vmatpush1.xpose.msra.mxu0 0.0
    %144 = vmatprep.subr.mxu0 0.0
    %145 = vmatpush1.xpose.msra.mxu0 0.0
    %146 = vmatprep.subr.mxu0 0.0
    %147 = vmatpush1.xpose.msra.mxu0 0.0
    %148 = vmatprep.subr.mxu0 0.0
    %149 = vmatpush1.xpose.msra.mxu0 0.0
    %150 = vmatprep.subr.mxu0 0.0
    %151 = vmatpush1.xpose.msra.mxu0 0.0
    %152 = vmatprep.subr.mxu0 0.0
    %153 = vmatpush1.xpose.msra.mxu0 0.0
    %154 = vmatprep.subr.mxu0 0.0
    %155 = vmatpush1.xpose.msra.mxu0 0.0
    %156 = vmatprep.subr.mxu0 0.0
    %157 = vmatpush1.xpose.msra.mxu0 0.0
    %158 = vmatprep.subr.mxu0 0.0
    %159 = vmatpush1.xpose.msra.mxu0 0.0
    %160 = vmatprep.subr.mxu0 0.0
    %161 = vmatpush1.xpose.msra.mxu0 0.0
    %162 = vmatprep.subr.mxu0 0.0
    %163 = vmatpush1.xpose.msra.mxu0 0.0
    %164 = vmatprep.subr.mxu0 0.0
    %165 = vmatpush1.xpose.msra.mxu0 0.0
    %166 = vmatprep.subr.mxu0 0.0
    %167 = vmatpush1.xpose.msra.mxu0 0.0
    %168 = vmatprep.subr.mxu0 0.0
    %169 = vmatpush1.xpose.msra.mxu0 0.0
    %170 = vmatprep.subr.mxu0 0.0
    %171 = vmatpush1.xpose.msra.mxu0 0.0
    %172 = vmatprep.subr.mxu0 0.0
    %173 = vmatpush1.xpose.msra.mxu0 0.0
    %174 = vmatprep.subr.mxu0 0.0
    %175 = vmatpush1.xpose.msra.mxu0 0.0
    %176 = vmatprep.subr.mxu0 0.0
    %177 = vmatpush1.xpose.msra.mxu0 0.0
    %178 = vmatprep.subr.mxu0 0.0
    %179 = vmatpush1.xpose.msra.mxu0 0.0
    %180 = vmatprep.subr.mxu0 0.0
    %181 = vmatpush1.xpose.msra.mxu0 0.0
    %182 = vmatprep.subr.mxu0 0.0
    %183 = vmatpush1.xpose.msra.mxu0 0.0
    %184 = vmatprep.subr.mxu0 0.0
    %185 = vmatpush1.xpose.msra.mxu0 0.0
    %186 = vmatprep.subr.mxu0 0.0
    %187 = vmatpush1.xpose.msra.mxu0 0.0
    %188 = vmatprep.subr.mxu0 0.0
    %189 = vmatpush1.xpose.msra.mxu0 0.0
    %190 = vmatprep.subr.mxu0 0.0
    %191 = vmatpush1.xpose.msra.mxu0 0.0
    %192 = vmatprep.subr.mxu0 0.0
    %193 = vmatpush1.xpose.msra.mxu0 0.0
    %194 = vmatprep.mubr.f32.mxu0 0.0
    %195 = vmatmul.mubr.f32.gmra.mrb[0].mxu0 %v113
    %v196 = vpop.f32.mrb[0].mxu0
    %v197 = vadd.f32 %v109, %v196
    %v198 = vpop.f32.mrb[0].mxu0
    %199 = vmatprep.mubr.f32.mxu0 0.0
    %200 = vmatmul.mubr.f32.gmra.mrb[0].mxu0 %v116
    %v201 = vpop.f32.mrb[0].mxu0
    %v202 = vadd.f32 %v109, %v201
    %v203 = vpop.f32.mrb[0].mxu0
    %204 = vdwg.mxu0
    %v205 = vld [vmem:[#allocation7] sm:$0xff]
    %v206 = vld [vmem:[#allocation7 + $0x8] sm:$0xff]
    %v207 = vld [vmem:[#allocation7 + $0x10] sm:$0xff]
    %v208 = vld [vmem:[#allocation7 + $0x18] sm:$0xff]
    %v209 = vld [vmem:[%s5] sm:$0x1]
    %v211 = vlaneseq
    %v212 = vshrl.u32 %v211, 7
    %v213 = vsub.s32 0, %v212
    %v214 = vrot.slane %v209, %v213
    %v217 = vsel %vm111, %v84, 0
    %v220 = vsel %vm111, %v85, 0
    %v223 = vsel %vm111, %v86, 0
    %v226 = vsel %vm111, %v87, 0
    %v229 = vsel %vm111, %v88, 0
    %v232 = vsel %vm111, %v89, 0
    %v235 = vsel %vm111, %v90, 0
    %v238 = vsel %vm111, %v91, 0
    %v241 = vsel %vm111, %v92, 0
    %v244 = vsel %vm111, %v93, 0
    %v247 = vsel %vm111, %v94, 0
    %v250 = vsel %vm111, %v95, 0
    %v253 = vsel %vm111, %v96, 0
    %v256 = vsel %vm111, %v97, 0
    %v259 = vsel %vm111, %v98, 0
    %v262 = vsel %vm111, %v99, 0
    %v265 = vsel %vm111, %v205, 0
    %v268 = vsel %vm111, %v206, 0
    %v271 = vsel %vm111, %v207, 0
    %v274 = vsel %vm111, %v208, 0
    %276 = vmatprep.subr.mxu0 0.0
    %277 = vmatpush1.xpose.msra.mxu0 %v265
    %278 = vmatprep.subr.mxu0 0.0
    %279 = vmatpush1.xpose.msra.mxu0 %v268
    %280 = vmatprep.subr.mxu0 0.0
    %281 = vmatpush1.xpose.msra.mxu0 %v271
    %282 = vmatprep.subr.mxu0 0.0
    %283 = vmatpush1.xpose.msra.mxu0 %v274
    %284 = vmatprep.subr.mxu0 0.0
    %285 = vmatpush1.xpose.msra.mxu0 0.0
    %286 = vmatprep.subr.mxu0 0.0
    %287 = vmatpush1.xpose.msra.mxu0 0.0
    %288 = vmatprep.subr.mxu0 0.0
    %289 = vmatpush1.xpose.msra.mxu0 0.0
    %290 = vmatprep.subr.mxu0 0.0
    %291 = vmatpush1.xpose.msra.mxu0 0.0
    %292 = vmatprep.subr.mxu0 0.0
    %293 = vmatpush1.xpose.msra.mxu0 0.0
    %294 = vmatprep.subr.mxu0 0.0
    %295 = vmatpush1.xpose.msra.mxu0 0.0
    %296 = vmatprep.subr.mxu0 0.0
    %297 = vmatpush1.xpose.msra.mxu0 0.0
    %298 = vmatprep.subr.mxu0 0.0
    %299 = vmatpush1.xpose.msra.mxu0 0.0
    %300 = vmatprep.subr.mxu0 0.0
    %301 = vmatpush1.xpose.msra.mxu0 0.0
    %302 = vmatprep.subr.mxu0 0.0
    %303 = vmatpush1.xpose.msra.mxu0 0.0
    %304 = vmatprep.subr.mxu0 0.0
    %305 = vmatpush1.xpose.msra.mxu0 0.0
    %306 = vmatprep.subr.mxu0 0.0
    %307 = vmatpush1.xpose.msra.mxu0 0.0
    %308 = vmatprep.subr.mxu0 0.0
    %309 = vmatpush1.xpose.msra.mxu0 0.0
    %310 = vmatprep.subr.mxu0 0.0
    %311 = vmatpush1.xpose.msra.mxu0 0.0
    %312 = vmatprep.subr.mxu0 0.0
    %313 = vmatpush1.xpose.msra.mxu0 0.0
    %314 = vmatprep.subr.mxu0 0.0
    %315 = vmatpush1.xpose.msra.mxu0 0.0
    %316 = vmatprep.subr.mxu0 0.0
    %317 = vmatpush1.xpose.msra.mxu0 0.0
    %318 = vmatprep.subr.mxu0 0.0
    %319 = vmatpush1.xpose.msra.mxu0 0.0
    %320 = vmatprep.subr.mxu0 0.0
    %321 = vmatpush1.xpose.msra.mxu0 0.0
    %322 = vmatprep.subr.mxu0 0.0
    %323 = vmatpush1.xpose.msra.mxu0 0.0
    %324 = vmatprep.subr.mxu0 0.0
    %325 = vmatpush1.xpose.msra.mxu0 0.0
    %326 = vmatprep.subr.mxu0 0.0
    %327 = vmatpush1.xpose.msra.mxu0 0.0
    %328 = vmatprep.subr.mxu0 0.0
    %329 = vmatpush1.xpose.msra.mxu0 0.0
    %330 = vmatprep.subr.mxu0 0.0
    %331 = vmatpush1.xpose.msra.mxu0 0.0
    %332 = vmatprep.subr.mxu0 0.0
    %333 = vmatpush1.xpose.msra.mxu0 0.0
    %334 = vmatprep.subr.mxu0 0.0
    %335 = vmatpush1.xpose.msra.mxu0 0.0
    %336 = vmatprep.subr.mxu0 0.0
    %337 = vmatpush1.xpose.msra.mxu0 0.0
    %338 = vmatprep.subr.mxu0 0.0
    %339 = vmatpush1.xpose.msra.mxu0 0.0
    %340 = vmatprep.mubr.f32.mxu0 0.0
    %341 = vmatmul.mubr.f32.gmra.mrb[0].mxu0 %v217
    %v342 = vpop.f32.mrb[0].mxu0
    %v343 = vadd.f32 %v214, %v342
    %v344 = vpop.f32.mrb[0].mxu0
    %345 = vmatprep.mubr.f32.mxu0 0.0
    %346 = vmatmul.mubr.f32.gmra.mrb[0].mxu0 %v220
    %v347 = vpop.f32.mrb[0].mxu0
    %v348 = vadd.f32 %v214, %v347
    %v349 = vpop.f32.mrb[0].mxu0
    %350 = vmatprep.mubr.f32.mxu0 0.0
    %351 = vmatmul.mubr.f32.gmra.mrb[0].mxu0 %v223
    %v352 = vpop.f32.mrb[0].mxu0
    %v353 = vadd.f32 %v214, %v352
    %v354 = vpop.f32.mrb[0].mxu0
    %355 = vmatprep.mubr.f32.mxu0 0.0
    %356 = vmatmul.mubr.f32.gmra.mrb[0].mxu0 %v226
    %v357 = vpop.f32.mrb[0].mxu0
    %v358 = vadd.f32 %v214, %v357
    %v359 = vpop.f32.mrb[0].mxu0
    %360 = vmatprep.mubr.f32.mxu0 0.0
    %361 = vmatmul.mubr.f32.gmra.mrb[0].mxu0 %v229
    %v362 = vpop.f32.mrb[0].mxu0
    %v363 = vadd.f32 %v214, %v362
    %v364 = vpop.f32.mrb[0].mxu0
    %365 = vmatprep.mubr.f32.mxu0 0.0
    %366 = vmatmul.mubr.f32.gmra.mrb[0].mxu0 %v232
    %v367 = vpop.f32.mrb[0].mxu0
    %v368 = vadd.f32 %v214, %v367
    %v369 = vpop.f32.mrb[0].mxu0
    %370 = vmatprep.mubr.f32.mxu0 0.0
    %371 = vmatmul.mubr.f32.gmra.mrb[0].mxu0 %v235
    %v372 = vpop.f32.mrb[0].mxu0
    %v373 = vadd.f32 %v214, %v372
    %v374 = vpop.f32.mrb[0].mxu0
    %375 = vmatprep.mubr.f32.mxu0 0.0
    %376 = vmatmul.mubr.f32.gmra.mrb[0].mxu0 %v238
    %v377 = vpop.f32.mrb[0].mxu0
    %v378 = vadd.f32 %v214, %v377
    %v379 = vpop.f32.mrb[0].mxu0
    %380 = vmatprep.mubr.f32.mxu0 0.0
    %381 = vmatmul.mubr.f32.gmra.mrb[0].mxu0 %v241
    %v382 = vpop.f32.mrb[0].mxu0
    %v383 = vadd.f32 %v214, %v382
    %v384 = vpop.f32.mrb[0].mxu0
    %385 = vmatprep.mubr.f32.mxu0 0.0
    %386 = vmatmul.mubr.f32.gmra.mrb[0].mxu0 %v244
    %v387 = vpop.f32.mrb[0].mxu0
    %v388 = vadd.f32 %v214, %v387
    %v389 = vpop.f32.mrb[0].mxu0
    %390 = vmatprep.mubr.f32.mxu0 0.0
    %391 = vmatmul.mubr.f32.gmra.mrb[0].mxu0 %v247
    %v392 = vpop.f32.mrb[0].mxu0
    %v393 = vadd.f32 %v214, %v392
    %v394 = vpop.f32.mrb[0].mxu0
    %395 = vmatprep.mubr.f32.mxu0 0.0
    %396 = vmatmul.mubr.f32.gmra.mrb[0].mxu0 %v250
    %v397 = vpop.f32.mrb[0].mxu0
    %v398 = vadd.f32 %v214, %v397
    %v399 = vpop.f32.mrb[0].mxu0
    %400 = vmatprep.mubr.f32.mxu0 0.0
    %401 = vmatmul.mubr.f32.gmra.mrb[0].mxu0 %v253
    %v402 = vpop.f32.mrb[0].mxu0
    %v403 = vadd.f32 %v214, %v402
    %v404 = vpop.f32.mrb[0].mxu0
    %405 = vmatprep.mubr.f32.mxu0 0.0
    %406 = vmatmul.mubr.f32.gmra.mrb[0].mxu0 %v256
    %v407 = vpop.f32.mrb[0].mxu0
    %v408 = vadd.f32 %v214, %v407
    %v409 = vpop.f32.mrb[0].mxu0
    %410 = vmatprep.mubr.f32.mxu0 0.0
    %411 = vmatmul.mubr.f32.gmra.mrb[0].mxu0 %v259
    %v412 = vpop.f32.mrb[0].mxu0
    %v413 = vadd.f32 %v214, %v412
    %v414 = vpop.f32.mrb[0].mxu0
    %415 = vmatprep.mubr.f32.mxu0 0.0
    %416 = vmatmul.mubr.f32.gmra.mrb[0].mxu0 %v262
    %v417 = vpop.f32.mrb[0].mxu0
    %v418 = vadd.f32 %v214, %v417
    %v419 = vpop.f32.mrb[0].mxu0
    %420 = vdwg.mxu0
    %v423 = vcombine.high %v197, %v197
    %v425 = vunpack.c.l.s4 1966171168
    %v426 = vunpack.c.0.s8 %v425
    %v427 = vlaneseq
    %v428 = vshrl.u32 %v427, 7
    %v429 = vsub.s32 %v426, %v428
    %v430 = vrot.slane %v197, %v429
    %v432 = vunpack.c.l.s4 1966171168
    %v433 = vunpack.c.0.s8 %v432
    %v434 = vlaneseq
    %v435 = vshrl.u32 %v434, 7
    %v436 = vsub.s32 %v433, %v435
    %v437 = vrot.slane %v423, %v436
    %v438 = vcombine.high %v430, %v430
    %v439 = vcombine.high %v437, %v437
    %v441 = vunpack.c.l.s4 1966171168
    %v442 = vunpack.c.0.s8 %v441
    %v443 = vlaneseq
    %v444 = vshrl.u32 %v443, 7
    %v445 = vsub.s32 %v442, %v444
    %v446 = vrot.slane %v430, %v445
    %v448 = vunpack.c.l.s4 1966171168
    %v449 = vunpack.c.0.s8 %v448
    %v450 = vlaneseq
    %v451 = vshrl.u32 %v450, 7
    %v452 = vsub.s32 %v449, %v451
    %v453 = vrot.slane %v437, %v452
    %v455 = vunpack.c.l.s4 1966171168
    %v456 = vunpack.c.0.s8 %v455
    %v457 = vlaneseq
    %v458 = vshrl.u32 %v457, 7
    %v459 = vsub.s32 %v456, %v458
    %v460 = vrot.slane %v438, %v459
    %v462 = vunpack.c.l.s4 1966171168
    %v463 = vunpack.c.0.s8 %v462
    %v464 = vlaneseq
    %v465 = vshrl.u32 %v464, 7
    %v466 = vsub.s32 %v463, %v465
    %v467 = vrot.slane %v439, %v466
    %v468 = vcombine.high %v446, %v446
    %v469 = vcombine.high %v453, %v453
    %v470 = vcombine.high %v460, %v460
    %v471 = vcombine.high %v467, %v467
    %v472 = vcombine.high %v202, %v202
    %v474 = vunpack.c.l.s4 1966171168
    %v475 = vunpack.c.0.s8 %v474
    %v476 = vlaneseq
    %v477 = vshrl.u32 %v476, 7
    %v478 = vsub.s32 %v475, %v477
    %v479 = vrot.slane %v202, %v478
    %v481 = vunpack.c.l.s4 1966171168
    %v482 = vunpack.c.0.s8 %v481
    %v483 = vlaneseq
    %v484 = vshrl.u32 %v483, 7
    %v485 = vsub.s32 %v482, %v484
    %v486 = vrot.slane %v472, %v485
    %v487 = vcombine.high %v479, %v479
    %v488 = vcombine.high %v486, %v486
    %v490 = vunpack.c.l.s4 1966171168
    %v491 = vunpack.c.0.s8 %v490
    %v492 = vlaneseq
    %v493 = vshrl.u32 %v492, 7
    %v494 = vsub.s32 %v491, %v493
    %v495 = vrot.slane %v479, %v494
    %v497 = vunpack.c.l.s4 1966171168
    %v498 = vunpack.c.0.s8 %v497
    %v499 = vlaneseq
    %v500 = vshrl.u32 %v499, 7
    %v501 = vsub.s32 %v498, %v500
    %v502 = vrot.slane %v486, %v501
    %v504 = vunpack.c.l.s4 1966171168
    %v505 = vunpack.c.0.s8 %v504
    %v506 = vlaneseq
    %v507 = vshrl.u32 %v506, 7
    %v508 = vsub.s32 %v505, %v507
    %v509 = vrot.slane %v487, %v508
    %v511 = vunpack.c.l.s4 1966171168
    %v512 = vunpack.c.0.s8 %v511
    %v513 = vlaneseq
    %v514 = vshrl.u32 %v513, 7
    %v515 = vsub.s32 %v512, %v514
    %v516 = vrot.slane %v488, %v515
    %v517 = vcombine.high %v495, %v495
    %v518 = vcombine.high %v502, %v502
    %v519 = vcombine.high %v509, %v509
    %v520 = vcombine.high %v516, %v516
    %v521 = vlaneseq
    %v522 = vshrl.u32 %v521, 7
    %v523 = vsub.s32 0, %v522
    %v524 = vrot.slane %v446, %v523
    %v525 = vlaneseq
    %v526 = vshrl.u32 %v525, 7
    %v527 = vsub.s32 0, %v526
    %v528 = vrot.slane %v460, %v527
    %v529 = vlaneseq
    %v530 = vshrl.u32 %v529, 7
    %v531 = vsub.s32 0, %v530
    %v532 = vrot.slane %v468, %v531
    %v533 = vlaneseq
    %v534 = vshrl.u32 %v533, 7
    %v535 = vsub.s32 0, %v534
    %v536 = vrot.slane %v470, %v535
    %v537 = vlaneseq
    %v538 = vshrl.u32 %v537, 7
    %v539 = vsub.s32 0, %v538
    %v540 = vrot.slane %v453, %v539
    %v541 = vlaneseq
    %v542 = vshrl.u32 %v541, 7
    %v543 = vsub.s32 0, %v542
    %v544 = vrot.slane %v467, %v543
    %v545 = vlaneseq
    %v546 = vshrl.u32 %v545, 7
    %v547 = vsub.s32 0, %v546
    %v548 = vrot.slane %v469, %v547
    %v549 = vlaneseq
    %v550 = vshrl.u32 %v549, 7
    %v551 = vsub.s32 0, %v550
    %v552 = vrot.slane %v471, %v551
    %v553 = vlaneseq
    %v554 = vshrl.u32 %v553, 7
    %v555 = vsub.s32 0, %v554
    %v556 = vrot.slane %v495, %v555
    %v557 = vlaneseq
    %v558 = vshrl.u32 %v557, 7
    %v559 = vsub.s32 0, %v558
    %v560 = vrot.slane %v509, %v559
    %v561 = vlaneseq
    %v562 = vshrl.u32 %v561, 7
    %v563 = vsub.s32 0, %v562
    %v564 = vrot.slane %v517, %v563
    %v565 = vlaneseq
    %v566 = vshrl.u32 %v565, 7
    %v567 = vsub.s32 0, %v566
    %v568 = vrot.slane %v519, %v567
    %v569 = vlaneseq
    %v570 = vshrl.u32 %v569, 7
    %v571 = vsub.s32 0, %v570
    %v572 = vrot.slane %v502, %v571
    %v573 = vlaneseq
    %v574 = vshrl.u32 %v573, 7
    %v575 = vsub.s32 0, %v574
    %v576 = vrot.slane %v516, %v575
    %v577 = vlaneseq
    %v578 = vshrl.u32 %v577, 7
    %v579 = vsub.s32 0, %v578
    %v580 = vrot.slane %v518, %v579
    %v581 = vlaneseq
    %v582 = vshrl.u32 %v581, 7
    %v583 = vsub.s32 0, %v582
    %v584 = vrot.slane %v520, %v583
    %v601 = vadd.f32 %v343, %v524
    %v602 = vadd.f32 %v348, %v528
    %v603 = vadd.f32 %v353, %v532
    %v604 = vadd.f32 %v358, %v536
    %v605 = vadd.f32 %v363, %v540
    %v606 = vadd.f32 %v368, %v544
    %v607 = vadd.f32 %v373, %v548
    %v608 = vadd.f32 %v378, %v552
    %v609 = vadd.f32 %v383, %v556
    %v610 = vadd.f32 %v388, %v560
    %v611 = vadd.f32 %v393, %v564
    %v612 = vadd.f32 %v398, %v568
    %v613 = vadd.f32 %v403, %v572
    %v614 = vadd.f32 %v408, %v576
    %v615 = vadd.f32 %v413, %v580
    %v616 = vadd.f32 %v418, %v584
    %v617 = vtanh.pop %v601
    %v618 = vtanh.pop %v602
    %v619 = vtanh.pop %v603
    %v620 = vtanh.pop %v604
    %v621 = vtanh.pop %v605
    %v622 = vtanh.pop %v606
    %v623 = vtanh.pop %v607
    %v624 = vtanh.pop %v608
    %v625 = vtanh.pop %v609
    %v626 = vtanh.pop %v610
    %v627 = vtanh.pop %v611
    %v628 = vtanh.pop %v612
    %v629 = vtanh.pop %v613
    %v630 = vtanh.pop %v614
    %v631 = vtanh.pop %v615
    %v632 = vtanh.pop %v616
    %v633 = vld [vmem:[#allocation8] sm:$0x1]
    %v635 = vlaneseq
    %v636 = vshrl.u32 %v635, 7
    %v637 = vsub.s32 0, %v636
    %v638 = vrot.slane %v633, %v637
    %v640 = vmul.f32 %v617, %v638
    %v641 = vmul.f32 %v618, %v638
    %v642 = vmul.f32 %v619, %v638
    %v643 = vmul.f32 %v620, %v638
    %v644 = vmul.f32 %v621, %v638
    %v645 = vmul.f32 %v622, %v638
    %v646 = vmul.f32 %v623, %v638
    %v647 = vmul.f32 %v624, %v638
    %v648 = vmul.f32 %v625, %v638
    %v649 = vmul.f32 %v626, %v638
    %v650 = vmul.f32 %v627, %v638
    %v651 = vmul.f32 %v628, %v638
    %v652 = vmul.f32 %v629, %v638
    %v653 = vmul.f32 %v630, %v638
    %v654 = vmul.f32 %v631, %v638
    %v655 = vmul.f32 %v632, %v638
    %v656 = vsel %vm111, %v640, 0.0
    %657 = vadd.xlane.f32.xlu0 %v656
    %v658 = vpop.xlane.xlu0 %657
    %v659 = vsel %vm111, %v641, 0.0
    %660 = vadd.xlane.f32.xlu0 %v659
    %v661 = vpop.xlane.xlu0 %660
    %v662 = vsel %vm111, %v642, 0.0
    %663 = vadd.xlane.f32.xlu0 %v662
    %v664 = vpop.xlane.xlu0 %663
    %v665 = vsel %vm111, %v643, 0.0
    %666 = vadd.xlane.f32.xlu0 %v665
    %v667 = vpop.xlane.xlu0 %666
    %v668 = vsel %vm111, %v644, 0.0
    %669 = vadd.xlane.f32.xlu0 %v668
    %v670 = vpop.xlane.xlu0 %669
    %v671 = vsel %vm111, %v645, 0.0
    %672 = vadd.xlane.f32.xlu0 %v671
    %v673 = vpop.xlane.xlu0 %672
    %v674 = vsel %vm111, %v646, 0.0
    %675 = vadd.xlane.f32.xlu0 %v674
    %v676 = vpop.xlane.xlu0 %675
    %v677 = vsel %vm111, %v647, 0.0
    %678 = vadd.xlane.f32.xlu0 %v677
    %v679 = vpop.xlane.xlu0 %678
    %v680 = vsel %vm111, %v648, 0.0
    %681 = vadd.xlane.f32.xlu0 %v680
    %v682 = vpop.xlane.xlu0 %681
    %v683 = vsel %vm111, %v649, 0.0
    %684 = vadd.xlane.f32.xlu0 %v683
    %v685 = vpop.xlane.xlu0 %684
    %v686 = vsel %vm111, %v650, 0.0
    %687 = vadd.xlane.f32.xlu0 %v686
    %v688 = vpop.xlane.xlu0 %687
    %v689 = vsel %vm111, %v651, 0.0
    %690 = vadd.xlane.f32.xlu0 %v689
    %v691 = vpop.xlane.xlu0 %690
    %v692 = vsel %vm111, %v652, 0.0
    %693 = vadd.xlane.f32.xlu0 %v692
    %v694 = vpop.xlane.xlu0 %693
    %v695 = vsel %vm111, %v653, 0.0
    %696 = vadd.xlane.f32.xlu0 %v695
    %v697 = vpop.xlane.xlu0 %696
    %v698 = vsel %vm111, %v654, 0.0
    %699 = vadd.xlane.f32.xlu0 %v698
    %v700 = vpop.xlane.xlu0 %699
    %v701 = vsel %vm111, %v655, 0.0
    %702 = vadd.xlane.f32.xlu0 %v701
    %v703 = vpop.xlane.xlu0 %702
    %v720 = vlaneseq
    %v721 = vand.u32 %v720, 127
    %v722 = vlaneseq
    %v723 = vshrl.u32 %v722, 7
    %v724 = vsub.s32 %v721, %v723
    %v725 = vrot.slane %v658, %v724
    %v726 = vlaneseq
    %v727 = vshrl.u32 %v726, 7
    %v728 = vsub.s32 %v721, %v727
    %v729 = vrot.slane %v661, %v728
    %v730 = vlaneseq
    %v731 = vshrl.u32 %v730, 7
    %v732 = vsub.s32 %v721, %v731
    %v733 = vrot.slane %v664, %v732
    %v734 = vlaneseq
    %v735 = vshrl.u32 %v734, 7
    %v736 = vsub.s32 %v721, %v735
    %v737 = vrot.slane %v667, %v736
    %v738 = vlaneseq
    %v739 = vshrl.u32 %v738, 7
    %v740 = vsub.s32 %v721, %v739
    %v741 = vrot.slane %v670, %v740
    %v742 = vlaneseq
    %v743 = vshrl.u32 %v742, 7
    %v744 = vsub.s32 %v721, %v743
    %v745 = vrot.slane %v673, %v744
    %v746 = vlaneseq
    %v747 = vshrl.u32 %v746, 7
    %v748 = vsub.s32 %v721, %v747
    %v749 = vrot.slane %v676, %v748
    %v750 = vlaneseq
    %v751 = vshrl.u32 %v750, 7
    %v752 = vsub.s32 %v721, %v751
    %v753 = vrot.slane %v679, %v752
    %v754 = vlaneseq
    %v755 = vshrl.u32 %v754, 7
    %v756 = vsub.s32 %v721, %v755
    %v757 = vrot.slane %v682, %v756
    %v758 = vlaneseq
    %v759 = vshrl.u32 %v758, 7
    %v760 = vsub.s32 %v721, %v759
    %v761 = vrot.slane %v685, %v760
    %v762 = vlaneseq
    %v763 = vshrl.u32 %v762, 7
    %v764 = vsub.s32 %v721, %v763
    %v765 = vrot.slane %v688, %v764
    %v766 = vlaneseq
    %v767 = vshrl.u32 %v766, 7
    %v768 = vsub.s32 %v721, %v767
    %v769 = vrot.slane %v691, %v768
    %v770 = vlaneseq
    %v771 = vshrl.u32 %v770, 7
    %v772 = vsub.s32 %v721, %v771
    %v773 = vrot.slane %v694, %v772
    %v774 = vlaneseq
    %v775 = vshrl.u32 %v774, 7
    %v776 = vsub.s32 %v721, %v775
    %v777 = vrot.slane %v697, %v776
    %v778 = vlaneseq
    %v779 = vshrl.u32 %v778, 7
    %v780 = vsub.s32 %v721, %v779
    %v781 = vrot.slane %v700, %v780
    %v782 = vlaneseq
    %v783 = vshrl.u32 %v782, 7
    %v784 = vsub.s32 %v721, %v783
    %v785 = vrot.slane %v703, %v784
    %vm786 = vcmask 1041409
    %v787 = vsel %vm786, %v729, %v725
    %vm788 = vcmask 1042434
    %v789 = vsel %vm788, %v733, %v787
    %vm790 = vcmask 1043459
    %v791 = vsel %vm790, %v737, %v789
    %vm792 = vcmask 1044484
    %v793 = vsel %vm792, %v741, %v791
    %vm794 = vcmask 1045509
    %v795 = vsel %vm794, %v745, %v793
    %vm796 = vcmask 1046534
    %v797 = vsel %vm796, %v749, %v795
    %vm798 = vcmask 1047559
    %v799 = vsel %vm798, %v753, %v797
    %v800 = vsel %vm786, %v761, %v757
    %v801 = vsel %vm788, %v765, %v800
    %v802 = vsel %vm790, %v769, %v801
    %v803 = vsel %vm792, %v773, %v802
    %v804 = vsel %vm794, %v777, %v803
    %v805 = vsel %vm796, %v781, %v804
    %v806 = vsel %vm798, %v785, %v805
    %vm809 = vcmask 64512
    %v810 = vsel %vm809, %v799, -inf
    %811 = vmax.xlane.f32.xlu0 %v810
    %v812 = vpop.xlane.xlu0 %811
    %v813 = vsel %vm809, %v806, -inf
    %814 = vmax.xlane.f32.xlu0 %v813
    %v815 = vpop.xlane.xlu0 %814
    %v818 = vlaneseq
    %v819 = vshrl.u32 %v818, 7
    %v820 = vsub.s32 0, %v819
    %v821 = vrot.slane %v812, %v820
    %v822 = vlaneseq
    %v823 = vshrl.u32 %v822, 7
    %v824 = vsub.s32 1, %v823
    %v825 = vrot.slane %v812, %v824
    %v826 = vlaneseq
    %v827 = vshrl.u32 %v826, 7
    %v828 = vsub.s32 2, %v827
    %v829 = vrot.slane %v812, %v828
    %v830 = vlaneseq
    %v831 = vshrl.u32 %v830, 7
    %v832 = vsub.s32 3, %v831
    %v833 = vrot.slane %v812, %v832
    %v834 = vlaneseq
    %v835 = vshrl.u32 %v834, 7
    %v836 = vsub.s32 4, %v835
    %v837 = vrot.slane %v812, %v836
    %v838 = vlaneseq
    %v839 = vshrl.u32 %v838, 7
    %v840 = vsub.s32 5, %v839
    %v841 = vrot.slane %v812, %v840
    %v842 = vlaneseq
    %v843 = vshrl.u32 %v842, 7
    %v844 = vsub.s32 6, %v843
    %v845 = vrot.slane %v812, %v844
    %v846 = vlaneseq
    %v847 = vshrl.u32 %v846, 7
    %v848 = vsub.s32 7, %v847
    %v849 = vrot.slane %v812, %v848
    %v850 = vlaneseq
    %v851 = vshrl.u32 %v850, 7
    %v852 = vsub.s32 0, %v851
    %v853 = vrot.slane %v815, %v852
    %v854 = vlaneseq
    %v855 = vshrl.u32 %v854, 7
    %v856 = vsub.s32 1, %v855
    %v857 = vrot.slane %v815, %v856
    %v858 = vlaneseq
    %v859 = vshrl.u32 %v858, 7
    %v860 = vsub.s32 2, %v859
    %v861 = vrot.slane %v815, %v860
    %v862 = vlaneseq
    %v863 = vshrl.u32 %v862, 7
    %v864 = vsub.s32 3, %v863
    %v865 = vrot.slane %v815, %v864
    %v866 = vlaneseq
    %v867 = vshrl.u32 %v866, 7
    %v868 = vsub.s32 4, %v867
    %v869 = vrot.slane %v815, %v868
    %v870 = vlaneseq
    %v871 = vshrl.u32 %v870, 7
    %v872 = vsub.s32 5, %v871
    %v873 = vrot.slane %v815, %v872
    %v874 = vlaneseq
    %v875 = vshrl.u32 %v874, 7
    %v876 = vsub.s32 6, %v875
    %v877 = vrot.slane %v815, %v876
    %v878 = vlaneseq
    %v879 = vshrl.u32 %v878, 7
    %v880 = vsub.s32 7, %v879
    %v881 = vrot.slane %v815, %v880
    %v898 = vsub.f32 %v658, %v821
    %v899 = vsub.f32 %v661, %v825
    %v900 = vsub.f32 %v664, %v829
    %v901 = vsub.f32 %v667, %v833
    %v902 = vsub.f32 %v670, %v837
    %v903 = vsub.f32 %v673, %v841
    %v904 = vsub.f32 %v676, %v845
    %v905 = vsub.f32 %v679, %v849
    %v906 = vsub.f32 %v682, %v853
    %v907 = vsub.f32 %v685, %v857
    %v908 = vsub.f32 %v688, %v861
    %v909 = vsub.f32 %v691, %v865
    %v910 = vsub.f32 %v694, %v869
    %v911 = vsub.f32 %v697, %v873
    %v912 = vsub.f32 %v700, %v877
    %v913 = vsub.f32 %v703, %v881
    %v914 = vmul.f32 %v898, 1.442695
    %v915 = vpow.pop %v914
    %v916 = vmul.f32 %v899, 1.442695
    %v917 = vpow.pop %v916
    %v918 = vmul.f32 %v900, 1.442695
    %v919 = vpow.pop %v918
    %v920 = vmul.f32 %v901, 1.442695
    %v921 = vpow.pop %v920
    %v922 = vmul.f32 %v902, 1.442695
    %v923 = vpow.pop %v922
    %v924 = vmul.f32 %v903, 1.442695
    %v925 = vpow.pop %v924
    %v926 = vmul.f32 %v904, 1.442695
    %v927 = vpow.pop %v926
    %v928 = vmul.f32 %v905, 1.442695
    %v929 = vpow.pop %v928
    %v930 = vmul.f32 %v906, 1.442695
    %v931 = vpow.pop %v930
    %v932 = vmul.f32 %v907, 1.442695
    %v933 = vpow.pop %v932
    %v934 = vmul.f32 %v908, 1.442695
    %v935 = vpow.pop %v934
    %v936 = vmul.f32 %v909, 1.442695
    %v937 = vpow.pop %v936
    %v938 = vmul.f32 %v910, 1.442695
    %v939 = vpow.pop %v938
    %v940 = vmul.f32 %v911, 1.442695
    %v941 = vpow.pop %v940
    %v942 = vmul.f32 %v912, 1.442695
    %v943 = vpow.pop %v942
    %v944 = vmul.f32 %v913, 1.442695
    %v945 = vpow.pop %v944
    %962 = vset.pattern.permute.xlu0 0
    %963 = vperm.xlu0 %962, %v915
    %v964 = vpop.permute.xlu0 %963
    %965 = vset.pattern.permute.xlu0 0
    %966 = vperm.xlu0 %965, %v917
    %v967 = vpop.permute.xlu0 %966
    %968 = vset.pattern.permute.xlu0 0
    %969 = vperm.xlu0 %968, %v919
    %v970 = vpop.permute.xlu0 %969
    %971 = vset.pattern.permute.xlu0 0
    %972 = vperm.xlu0 %971, %v921
    %v973 = vpop.permute.xlu0 %972
    %974 = vset.pattern.permute.xlu0 0
    %975 = vperm.xlu0 %974, %v923
    %v976 = vpop.permute.xlu0 %975
    %977 = vset.pattern.permute.xlu0 0
    %978 = vperm.xlu0 %977, %v925
    %v979 = vpop.permute.xlu0 %978
    %980 = vset.pattern.permute.xlu0 0
    %981 = vperm.xlu0 %980, %v927
    %v982 = vpop.permute.xlu0 %981
    %983 = vset.pattern.permute.xlu0 0
    %984 = vperm.xlu0 %983, %v929
    %v985 = vpop.permute.xlu0 %984
    %986 = vset.pattern.permute.xlu0 0
    %987 = vperm.xlu0 %986, %v931
    %v988 = vpop.permute.xlu0 %987
    %989 = vset.pattern.permute.xlu0 0
    %990 = vperm.xlu0 %989, %v933
    %v991 = vpop.permute.xlu0 %990
    %992 = vset.pattern.permute.xlu0 0
    %993 = vperm.xlu0 %992, %v935
    %v994 = vpop.permute.xlu0 %993
    %995 = vset.pattern.permute.xlu0 0
    %996 = vperm.xlu0 %995, %v937
    %v997 = vpop.permute.xlu0 %996
    %998 = vset.pattern.permute.xlu0 0
    %999 = vperm.xlu0 %998, %v939
    %v1000 = vpop.permute.xlu0 %999
    %1001 = vset.pattern.permute.xlu0 0
    %1002 = vperm.xlu0 %1001, %v941
    %v1003 = vpop.permute.xlu0 %1002
    %1004 = vset.pattern.permute.xlu0 0
    %1005 = vperm.xlu0 %1004, %v943
    %v1006 = vpop.permute.xlu0 %1005
    %1007 = vset.pattern.permute.xlu0 0
    %1008 = vperm.xlu0 %1007, %v945
    %v1009 = vpop.permute.xlu0 %1008
    %v1010 = vlaneseq
    %v1011 = vshrl.u32 %v1010, 7
    %v1012 = vsub.s32 %v721, %v1011
    %v1013 = vrot.slane %v964, %v1012
    %v1014 = vlaneseq
    %v1015 = vshrl.u32 %v1014, 7
    %v1016 = vsub.s32 %v721, %v1015
    %v1017 = vrot.slane %v967, %v1016
    %v1018 = vlaneseq
    %v1019 = vshrl.u32 %v1018, 7
    %v1020 = vsub.s32 %v721, %v1019
    %v1021 = vrot.slane %v970, %v1020
    %v1022 = vlaneseq
    %v1023 = vshrl.u32 %v1022, 7
    %v1024 = vsub.s32 %v721, %v1023
    %v1025 = vrot.slane %v973, %v1024
    %v1026 = vlaneseq
    %v1027 = vshrl.u32 %v1026, 7
    %v1028 = vsub.s32 %v721, %v1027
    %v1029 = vrot.slane %v976, %v1028
    %v1030 = vlaneseq
    %v1031 = vshrl.u32 %v1030, 7
    %v1032 = vsub.s32 %v721, %v1031
    %v1033 = vrot.slane %v979, %v1032
    %v1034 = vlaneseq
    %v1035 = vshrl.u32 %v1034, 7
    %v1036 = vsub.s32 %v721, %v1035
    %v1037 = vrot.slane %v982, %v1036
    %v1038 = vlaneseq
    %v1039 = vshrl.u32 %v1038, 7
    %v1040 = vsub.s32 %v721, %v1039
    %v1041 = vrot.slane %v985, %v1040
    %v1042 = vlaneseq
    %v1043 = vshrl.u32 %v1042, 7
    %v1044 = vsub.s32 %v721, %v1043
    %v1045 = vrot.slane %v988, %v1044
    %v1046 = vlaneseq
    %v1047 = vshrl.u32 %v1046, 7
    %v1048 = vsub.s32 %v721, %v1047
    %v1049 = vrot.slane %v991, %v1048
    %v1050 = vlaneseq
    %v1051 = vshrl.u32 %v1050, 7
    %v1052 = vsub.s32 %v721, %v1051
    %v1053 = vrot.slane %v994, %v1052
    %v1054 = vlaneseq
    %v1055 = vshrl.u32 %v1054, 7
    %v1056 = vsub.s32 %v721, %v1055
    %v1057 = vrot.slane %v997, %v1056
    %v1058 = vlaneseq
    %v1059 = vshrl.u32 %v1058, 7
    %v1060 = vsub.s32 %v721, %v1059
    %v1061 = vrot.slane %v1000, %v1060
    %v1062 = vlaneseq
    %v1063 = vshrl.u32 %v1062, 7
    %v1064 = vsub.s32 %v721, %v1063
    %v1065 = vrot.slane %v1003, %v1064
    %v1066 = vlaneseq
    %v1067 = vshrl.u32 %v1066, 7
    %v1068 = vsub.s32 %v721, %v1067
    %v1069 = vrot.slane %v1006, %v1068
    %v1070 = vlaneseq
    %v1071 = vshrl.u32 %v1070, 7
    %v1072 = vsub.s32 %v721, %v1071
    %v1073 = vrot.slane %v1009, %v1072
    %v1074 = vsel %vm786, %v1017, %v1013
    %v1075 = vsel %vm788, %v1021, %v1074
    %v1076 = vsel %vm790, %v1025, %v1075
    %v1077 = vsel %vm792, %v1029, %v1076
    %v1078 = vsel %vm794, %v1033, %v1077
    %v1079 = vsel %vm796, %v1037, %v1078
    %v1080 = vsel %vm798, %v1041, %v1079
    %v1081 = vsel %vm786, %v1049, %v1045
    %v1082 = vsel %vm788, %v1053, %v1081
    %v1083 = vsel %vm790, %v1057, %v1082
    %v1084 = vsel %vm792, %v1061, %v1083
    %v1085 = vsel %vm794, %v1065, %v1084
    %v1086 = vsel %vm796, %v1069, %v1085
    %v1087 = vsel %vm798, %v1073, %v1086
    %v1090 = vsel %vm809, %v1080, 0.0
    %1091 = vadd.xlane.f32.xlu0 %v1090
    %v1092 = vpop.xlane.xlu0 %1091
    %v1093 = vsel %vm809, %v1087, 0.0
    %1094 = vadd.xlane.f32.xlu0 %v1093
    %v1095 = vpop.xlane.xlu0 %1094
    %v1096 = vrcp.pop %v1092
    %v1097 = vrcp.pop %v1095
    %v1100 = vlaneseq
    %v1101 = vshrl.u32 %v1100, 7
    %v1102 = vsub.s32 0, %v1101
    %v1103 = vrot.slane %v1096, %v1102
    %v1104 = vlaneseq
    %v1105 = vshrl.u32 %v1104, 7
    %v1106 = vsub.s32 1, %v1105
    %v1107 = vrot.slane %v1096, %v1106
    %v1108 = vlaneseq
    %v1109 = vshrl.u32 %v1108, 7
    %v1110 = vsub.s32 2, %v1109
    %v1111 = vrot.slane %v1096, %v1110
    %v1112 = vlaneseq
    %v1113 = vshrl.u32 %v1112, 7
    %v1114 = vsub.s32 3, %v1113
    %v1115 = vrot.slane %v1096, %v1114
    %v1116 = vlaneseq
    %v1117 = vshrl.u32 %v1116, 7
    %v1118 = vsub.s32 4, %v1117
    %v1119 = vrot.slane %v1096, %v1118
    %v1120 = vlaneseq
    %v1121 = vshrl.u32 %v1120, 7
    %v1122 = vsub.s32 5, %v1121
    %v1123 = vrot.slane %v1096, %v1122
    %v1124 = vlaneseq
    %v1125 = vshrl.u32 %v1124, 7
    %v1126 = vsub.s32 6, %v1125
    %v1127 = vrot.slane %v1096, %v1126
    %v1128 = vlaneseq
    %v1129 = vshrl.u32 %v1128, 7
    %v1130 = vsub.s32 7, %v1129
    %v1131 = vrot.slane %v1096, %v1130
    %v1132 = vlaneseq
    %v1133 = vshrl.u32 %v1132, 7
    %v1134 = vsub.s32 0, %v1133
    %v1135 = vrot.slane %v1097, %v1134
    %v1136 = vlaneseq
    %v1137 = vshrl.u32 %v1136, 7
    %v1138 = vsub.s32 1, %v1137
    %v1139 = vrot.slane %v1097, %v1138
    %v1140 = vlaneseq
    %v1141 = vshrl.u32 %v1140, 7
    %v1142 = vsub.s32 2, %v1141
    %v1143 = vrot.slane %v1097, %v1142
    %v1144 = vlaneseq
    %v1145 = vshrl.u32 %v1144, 7
    %v1146 = vsub.s32 3, %v1145
    %v1147 = vrot.slane %v1097, %v1146
    %v1148 = vlaneseq
    %v1149 = vshrl.u32 %v1148, 7
    %v1150 = vsub.s32 4, %v1149
    %v1151 = vrot.slane %v1097, %v1150
    %v1152 = vlaneseq
    %v1153 = vshrl.u32 %v1152, 7
    %v1154 = vsub.s32 5, %v1153
    %v1155 = vrot.slane %v1097, %v1154
    %v1156 = vlaneseq
    %v1157 = vshrl.u32 %v1156, 7
    %v1158 = vsub.s32 6, %v1157
    %v1159 = vrot.slane %v1097, %v1158
    %v1160 = vlaneseq
    %v1161 = vshrl.u32 %v1160, 7
    %v1162 = vsub.s32 7, %v1161
    %v1163 = vrot.slane %v1097, %v1162
    %v1180 = vmul.f32 %v915, %v1103
    %v1181 = vmul.f32 %v917, %v1107
    %v1182 = vmul.f32 %v919, %v1111
    %v1183 = vmul.f32 %v921, %v1115
    %v1184 = vmul.f32 %v923, %v1119
    %v1185 = vmul.f32 %v925, %v1123
    %v1186 = vmul.f32 %v927, %v1127
    %v1187 = vmul.f32 %v929, %v1131
    %v1188 = vmul.f32 %v931, %v1135
    %v1189 = vmul.f32 %v933, %v1139
    %v1190 = vmul.f32 %v935, %v1143
    %v1191 = vmul.f32 %v937, %v1147
    %v1192 = vmul.f32 %v939, %v1151
    %v1193 = vmul.f32 %v941, %v1155
    %v1194 = vmul.f32 %v943, %v1159
    %v1195 = vmul.f32 %v945, %v1163
    %1197 = vset.pattern.permute.xlu0 0
    %1198 = vperm.xlu0 %1197, %v1180
    %v1199 = vpop.permute.xlu0 %1198
    %1202 = vset.pattern.permute.xlu0 0
    %1203 = vperm.xlu0 %1202, %v1181
    %v1204 = vpop.permute.xlu0 %1203
    %1207 = vset.pattern.permute.xlu0 0
    %1208 = vperm.xlu0 %1207, %v1182
    %v1209 = vpop.permute.xlu0 %1208
    %1212 = vset.pattern.permute.xlu0 0
    %1213 = vperm.xlu0 %1212, %v1183
    %v1214 = vpop.permute.xlu0 %1213
    %1217 = vset.pattern.permute.xlu0 0
    %1218 = vperm.xlu0 %1217, %v1184
    %v1219 = vpop.permute.xlu0 %1218
    %1222 = vset.pattern.permute.xlu0 0
    %1223 = vperm.xlu0 %1222, %v1185
    %v1224 = vpop.permute.xlu0 %1223
    %1227 = vset.pattern.permute.xlu0 0
    %1228 = vperm.xlu0 %1227, %v1186
    %v1229 = vpop.permute.xlu0 %1228
    %1232 = vset.pattern.permute.xlu0 0
    %1233 = vperm.xlu0 %1232, %v1187
    %v1234 = vpop.permute.xlu0 %1233
    %1237 = vset.pattern.permute.xlu0 0
    %1238 = vperm.xlu0 %1237, %v1188
    %v1239 = vpop.permute.xlu0 %1238
    %1242 = vset.pattern.permute.xlu0 0
    %1243 = vperm.xlu0 %1242, %v1189
    %v1244 = vpop.permute.xlu0 %1243
    %1247 = vset.pattern.permute.xlu0 0
    %1248 = vperm.xlu0 %1247, %v1190
    %v1249 = vpop.permute.xlu0 %1248
    %1252 = vset.pattern.permute.xlu0 0
    %1253 = vperm.xlu0 %1252, %v1191
    %v1254 = vpop.permute.xlu0 %1253
    %1257 = vset.pattern.permute.xlu0 0
    %1258 = vperm.xlu0 %1257, %v1192
    %v1259 = vpop.permute.xlu0 %1258
    %1262 = vset.pattern.permute.xlu0 0
    %1263 = vperm.xlu0 %1262, %v1193
    %v1264 = vpop.permute.xlu0 %1263
    %1267 = vset.pattern.permute.xlu0 0
    %1268 = vperm.xlu0 %1267, %v1194
    %v1269 = vpop.permute.xlu0 %1268
    %1272 = vset.pattern.permute.xlu0 0
    %1273 = vperm.xlu0 %1272, %v1195
    %v1274 = vpop.permute.xlu0 %1273
    %v1276 = vmul.f32 %v1199, %v84
    %v1277 = vmul.f32 %v1204, %v85
    %v1278 = vmul.f32 %v1209, %v86
    %v1279 = vmul.f32 %v1214, %v87
    %v1280 = vmul.f32 %v1219, %v88
    %v1281 = vmul.f32 %v1224, %v89
    %v1282 = vmul.f32 %v1229, %v90
    %v1283 = vmul.f32 %v1234, %v91
    %v1284 = vmul.f32 %v1239, %v92
    %v1285 = vmul.f32 %v1244, %v93
    %v1286 = vmul.f32 %v1249, %v94
    %v1287 = vmul.f32 %v1254, %v95
    %v1288 = vmul.f32 %v1259, %v96
    %v1289 = vmul.f32 %v1264, %v97
    %v1290 = vmul.f32 %v1269, %v98
    %v1291 = vmul.f32 %v1274, %v99
    %v1292 = vsel %vm111, %v1276, 0.0
    %v1293 = vrot.slane %v1292, 4
    %v1294 = vadd.f32 %v1292, %v1293
    %v1295 = vrot.slane %v1294, 2
    %v1296 = vadd.f32 %v1294, %v1295
    %v1297 = vrot.slane %v1296, 1
    %v1298 = vadd.f32 %v1296, %v1297
    %v1299 = vsel %vm111, %v1277, 0.0
    %v1300 = vrot.slane %v1299, 4
    %v1301 = vadd.f32 %v1299, %v1300
    %v1302 = vrot.slane %v1301, 2
    %v1303 = vadd.f32 %v1301, %v1302
    %v1304 = vrot.slane %v1303, 1
    %v1305 = vadd.f32 %v1303, %v1304
    %v1306 = vsel %vm111, %v1278, 0.0
    %v1307 = vrot.slane %v1306, 4
    %v1308 = vadd.f32 %v1306, %v1307
    %v1309 = vrot.slane %v1308, 2
    %v1310 = vadd.f32 %v1308, %v1309
    %v1311 = vrot.slane %v1310, 1
    %v1312 = vadd.f32 %v1310, %v1311
    %v1313 = vsel %vm111, %v1279, 0.0
    %v1314 = vrot.slane %v1313, 4
    %v1315 = vadd.f32 %v1313, %v1314
    %v1316 = vrot.slane %v1315, 2
    %v1317 = vadd.f32 %v1315, %v1316
    %v1318 = vrot.slane %v1317, 1
    %v1319 = vadd.f32 %v1317, %v1318
    %v1320 = vsel %vm111, %v1280, 0.0
    %v1321 = vrot.slane %v1320, 4
    %v1322 = vadd.f32 %v1320, %v1321
    %v1323 = vrot.slane %v1322, 2
    %v1324 = vadd.f32 %v1322, %v1323
    %v1325 = vrot.slane %v1324, 1
    %v1326 = vadd.f32 %v1324, %v1325
    %v1327 = vsel %vm111, %v1281, 0.0
    %v1328 = vrot.slane %v1327, 4
    %v1329 = vadd.f32 %v1327, %v1328
    %v1330 = vrot.slane %v1329, 2
    %v1331 = vadd.f32 %v1329, %v1330
    %v1332 = vrot.slane %v1331, 1
    %v1333 = vadd.f32 %v1331, %v1332
    %v1334 = vsel %vm111, %v1282, 0.0
    %v1335 = vrot.slane %v1334, 4
    %v1336 = vadd.f32 %v1334, %v1335
    %v1337 = vrot.slane %v1336, 2
    %v1338 = vadd.f32 %v1336, %v1337
    %v1339 = vrot.slane %v1338, 1
    %v1340 = vadd.f32 %v1338, %v1339
    %v1341 = vsel %vm111, %v1283, 0.0
    %v1342 = vrot.slane %v1341, 4
    %v1343 = vadd.f32 %v1341, %v1342
    %v1344 = vrot.slane %v1343, 2
    %v1345 = vadd.f32 %v1343, %v1344
    %v1346 = vrot.slane %v1345, 1
    %v1347 = vadd.f32 %v1345, %v1346
    %v1348 = vsel %vm111, %v1284, 0.0
    %v1349 = vrot.slane %v1348, 4
    %v1350 = vadd.f32 %v1348, %v1349
    %v1351 = vrot.slane %v1350, 2
    %v1352 = vadd.f32 %v1350, %v1351
    %v1353 = vrot.slane %v1352, 1
    %v1354 = vadd.f32 %v1352, %v1353
    %v1355 = vsel %vm111, %v1285, 0.0
    %v1356 = vrot.slane %v1355, 4
    %v1357 = vadd.f32 %v1355, %v1356
    %v1358 = vrot.slane %v1357, 2
    %v1359 = vadd.f32 %v1357, %v1358
    %v1360 = vrot.slane %v1359, 1
    %v1361 = vadd.f32 %v1359, %v1360
    %v1362 = vsel %vm111, %v1286, 0.0
    %v1363 = vrot.slane %v1362, 4
    %v1364 = vadd.f32 %v1362, %v1363
    %v1365 = vrot.slane %v1364, 2
    %v1366 = vadd.f32 %v1364, %v1365
    %v1367 = vrot.slane %v1366, 1
    %v1368 = vadd.f32 %v1366, %v1367
    %v1369 = vsel %vm111, %v1287, 0.0
    %v1370 = vrot.slane %v1369, 4
    %v1371 = vadd.f32 %v1369, %v1370
    %v1372 = vrot.slane %v1371, 2
    %v1373 = vadd.f32 %v1371, %v1372
    %v1374 = vrot.slane %v1373, 1
    %v1375 = vadd.f32 %v1373, %v1374
    %v1376 = vsel %vm111, %v1288, 0.0
    %v1377 = vrot.slane %v1376, 4
    %v1378 = vadd.f32 %v1376, %v1377
    %v1379 = vrot.slane %v1378, 2
    %v1380 = vadd.f32 %v1378, %v1379
    %v1381 = vrot.slane %v1380, 1
    %v1382 = vadd.f32 %v1380, %v1381
    %v1383 = vsel %vm111, %v1289, 0.0
    %v1384 = vrot.slane %v1383, 4
    %v1385 = vadd.f32 %v1383, %v1384
    %v1386 = vrot.slane %v1385, 2
    %v1387 = vadd.f32 %v1385, %v1386
    %v1388 = vrot.slane %v1387, 1
    %v1389 = vadd.f32 %v1387, %v1388
    %v1390 = vsel %vm111, %v1290, 0.0
    %v1391 = vrot.slane %v1390, 4
    %v1392 = vadd.f32 %v1390, %v1391
    %v1393 = vrot.slane %v1392, 2
    %v1394 = vadd.f32 %v1392, %v1393
    %v1395 = vrot.slane %v1394, 1
    %v1396 = vadd.f32 %v1394, %v1395
    %v1397 = vsel %vm111, %v1291, 0.0
    %v1398 = vrot.slane %v1397, 4
    %v1399 = vadd.f32 %v1397, %v1398
    %v1400 = vrot.slane %v1399, 2
    %v1401 = vadd.f32 %v1399, %v1400
    %v1402 = vrot.slane %v1401, 1
    %v1403 = vadd.f32 %v1401, %v1402
    %v1420 = vsel %vm786, %v1305, %v1298
    %v1421 = vsel %vm788, %v1312, %v1420
    %v1422 = vsel %vm790, %v1319, %v1421
    %v1423 = vsel %vm792, %v1326, %v1422
    %v1424 = vsel %vm794, %v1333, %v1423
    %v1425 = vsel %vm796, %v1340, %v1424
    %v1426 = vsel %vm798, %v1347, %v1425
    %v1427 = vsel %vm786, %v1361, %v1354
    %v1428 = vsel %vm788, %v1368, %v1427
    %v1429 = vsel %vm790, %v1375, %v1428
    %v1430 = vsel %vm792, %v1382, %v1429
    %v1431 = vsel %vm794, %v1389, %v1430
    %v1432 = vsel %vm796, %v1396, %v1431
    %v1433 = vsel %vm798, %v1403, %v1432
    %1436 = vst.msk [vmem:[#allocation10] sm:$0xff] %vm111, %v1426
    %1437 = vst.msk [vmem:[#allocation10 + $0x8] sm:$0xff] %vm111, %v1433
    %v1438 = vlaneseq
    %v1439 = vshrl.u32 %v1438, 7
    %v1440 = vsub.s32 %v721, %v1439
    %v1441 = vrot.slane %v1199, %v1440
    %v1442 = vlaneseq
    %v1443 = vshrl.u32 %v1442, 7
    %v1444 = vsub.s32 %v721, %v1443
    %v1445 = vrot.slane %v1204, %v1444
    %v1446 = vlaneseq
    %v1447 = vshrl.u32 %v1446, 7
    %v1448 = vsub.s32 %v721, %v1447
    %v1449 = vrot.slane %v1209, %v1448
    %v1450 = vlaneseq
    %v1451 = vshrl.u32 %v1450, 7
    %v1452 = vsub.s32 %v721, %v1451
    %v1453 = vrot.slane %v1214, %v1452
    %v1454 = vlaneseq
    %v1455 = vshrl.u32 %v1454, 7
    %v1456 = vsub.s32 %v721, %v1455
    %v1457 = vrot.slane %v1219, %v1456
    %v1458 = vlaneseq
    %v1459 = vshrl.u32 %v1458, 7
    %v1460 = vsub.s32 %v721, %v1459
    %v1461 = vrot.slane %v1224, %v1460
    %v1462 = vlaneseq
    %v1463 = vshrl.u32 %v1462, 7
    %v1464 = vsub.s32 %v721, %v1463
    %v1465 = vrot.slane %v1229, %v1464
    %v1466 = vlaneseq
    %v1467 = vshrl.u32 %v1466, 7
    %v1468 = vsub.s32 %v721, %v1467
    %v1469 = vrot.slane %v1234, %v1468
    %v1470 = vlaneseq
    %v1471 = vshrl.u32 %v1470, 7
    %v1472 = vsub.s32 %v721, %v1471
    %v1473 = vrot.slane %v1239, %v1472
    %v1474 = vlaneseq
    %v1475 = vshrl.u32 %v1474, 7
    %v1476 = vsub.s32 %v721, %v1475
    %v1477 = vrot.slane %v1244, %v1476
    %v1478 = vlaneseq
    %v1479 = vshrl.u32 %v1478, 7
    %v1480 = vsub.s32 %v721, %v1479
    %v1481 = vrot.slane %v1249, %v1480
    %v1482 = vlaneseq
    %v1483 = vshrl.u32 %v1482, 7
    %v1484 = vsub.s32 %v721, %v1483
    %v1485 = vrot.slane %v1254, %v1484
    %v1486 = vlaneseq
    %v1487 = vshrl.u32 %v1486, 7
    %v1488 = vsub.s32 %v721, %v1487
    %v1489 = vrot.slane %v1259, %v1488
    %v1490 = vlaneseq
    %v1491 = vshrl.u32 %v1490, 7
    %v1492 = vsub.s32 %v721, %v1491
    %v1493 = vrot.slane %v1264, %v1492
    %v1494 = vlaneseq
    %v1495 = vshrl.u32 %v1494, 7
    %v1496 = vsub.s32 %v721, %v1495
    %v1497 = vrot.slane %v1269, %v1496
    %v1498 = vlaneseq
    %v1499 = vshrl.u32 %v1498, 7
    %v1500 = vsub.s32 %v721, %v1499
    %v1501 = vrot.slane %v1274, %v1500
    %v1502 = vsel %vm786, %v1445, %v1441
    %v1503 = vsel %vm788, %v1449, %v1502
    %v1504 = vsel %vm790, %v1453, %v1503
    %v1505 = vsel %vm792, %v1457, %v1504
    %v1506 = vsel %vm794, %v1461, %v1505
    %v1507 = vsel %vm796, %v1465, %v1506
    %v1508 = vsel %vm798, %v1469, %v1507
    %v1509 = vsel %vm786, %v1477, %v1473
    %v1510 = vsel %vm788, %v1481, %v1509
    %v1511 = vsel %vm790, %v1485, %v1510
    %v1512 = vsel %vm792, %v1489, %v1511
    %v1513 = vsel %vm794, %v1493, %v1512
    %v1514 = vsel %vm796, %v1497, %v1513
    %v1515 = vsel %vm798, %v1501, %v1514
    %1518 = vst.msk [vmem:[%s8] sm:$0xff] %vm809, %v1508
    %1519 = vst.msk [vmem:[%s8 + $0x8] sm:$0xff] %vm809, %v1515
    // Predicated region
    $region46: #{bahdanau_attention.1} parent=1 // pred_check
      _
    $region47: #{bahdanau_attention.1} parent=1 // pred_check_branch
      %1521 = sbr.rel (0) target = $region49
    $region48: #{bahdanau_attention.1} parent=1 // pred_region
      %s1523 = ssub.s32 256, 256
      %1524 = vsyncadd [#allocation4], %s1523
      %s1525 = sshll.u32 [#allocation10], 4
      %s1526 = int_to_ptr.vmem [resolvable:$true] %s1525
      %1531 = dma.vmem_to_hbm [thread:$0]  %s1526, 256, %s7, [#allocation4], 128, 128, 8
    $region49: #{bahdanau_attention.1} parent=1 // pred_fallthru
      _
    // Predicated region
    $region50: #{bahdanau_attention.1} parent=1 // pred_check
      _
    $region51: #{bahdanau_attention.1} parent=1 // pred_check_branch
      %1533 = sbr.rel (0) target = $region53
    $region52: #{bahdanau_attention.1} parent=1 // pred_region
      _
    $region53: #{bahdanau_attention.1} parent=1 // pred_fallthru
      _
    // Predicated region
    $region54: #{bahdanau_attention.1} parent=1 // pred_check
      _
    $region55: #{bahdanau_attention.1} parent=1 // pred_check_branch
      %1535 = sbr.rel (0) target = $region57
    $region56: #{bahdanau_attention.1} parent=1 // pred_region
      %1536 = dma.done [#allocation4], 256
    $region57: #{bahdanau_attention.1} parent=1 // pred_fallthru
      _
    // Predicated region
    $region58: #{bahdanau_attention.1} parent=1 // pred_check
      _
    $region59: #{bahdanau_attention.1} parent=1 // pred_check_branch
      %1538 = sbr.rel (0) target = $region61
    $region60: #{bahdanau_attention.1} parent=1 // pred_region
      _
    $region61: #{bahdanau_attention.1} parent=1 // pred_fallthru
      _
    %1539 = vsyncpa [#allocation3], 1
    %1540 = vsyncpa [#allocation6], 1
    %1541 = vsyncpa [#allocation9], 1
    %1542 = vsyncpa [#allocation4], 1

</llo_original>
